<compile_context>
chip_gen: v6e
topology: v6e:2x2x1
jax: 0.10.0
libtpu: 0.0.40
codegen_flags: <defaults>
</compile_context>

<pallas_src>
import math

import jax
import jax.numpy as jnp
from jax.experimental import pallas as pl
from jax.experimental.pallas import tpu as pltpu

_TILE_BYTES = 4 * 1024 * 1024          # ~4 MiB per tile (f32: 2048 x 512)
_VMEM_LIMIT = 32 * 1024 * 1024         # safe scoped-VMEM budget on v5e/v6e/v7x


def _linear_corr_kernel(scale_ref, bias_ref, y_ref, o_ref):
    # scale_ref / bias_ref: (1,) f32 scalars in SMEM.
    # y_ref / o_ref: (TM, LANE) VMEM tiles of the flattened y_low.
    s = scale_ref[0]
    b = bias_ref[0]
    o_ref[...] = (y_ref[...] * s + b).astype(o_ref.dtype)


def _sublane(dtype) -> int:
    """Rows per sublane-packing unit: 8 for 4-byte, 16 for 2-byte, 32 for 1-byte."""
    return max(8, 32 // jnp.dtype(dtype).itemsize)


def _choose_lane(n_elems: int, sub: int):
    """Widest lane-dense last dim that divides n_elems (prefer sublane-aligned rows)."""
    for lane in (512, 256, 128):
        if n_elems % lane == 0 and (n_elems // lane) % sub == 0:
            return lane
    for lane in (512, 256, 128):
        if n_elems % lane == 0:
            return lane
    return None


def _run_aligned(flat, scale32, bias32, lane, out_dtype):
    """Run the kernel on a flat array whose length is a multiple of `lane`."""
    total = flat.shape[0]
    itemsize = jnp.dtype(flat.dtype).itemsize
    sub = _sublane(flat.dtype)
    m = total // lane

    # Tile rows: ~_TILE_BYTES per tile, multiple of the sublane count, and no
    # larger than the (sublane-rounded) row count — no whole-tile padding.
    tm = _TILE_BYTES // (lane * itemsize)
    tm = max(sub, (tm // sub) * sub)
    tm = min(tm, ((m + sub - 1) // sub) * sub)
    grid = (pl.cdiv(m, tm),)

    y2d = flat.reshape(m, lane)  # free bitcast-style reshape of contiguous data

    out2d = pl.pallas_call(
        _linear_corr_kernel,
        out_shape=jax.ShapeDtypeStruct((m, lane), out_dtype),
        grid=grid,
        in_specs=[
            pl.BlockSpec(memory_space=pltpu.MemorySpace.SMEM),   # scale (1,)
            pl.BlockSpec(memory_space=pltpu.MemorySpace.SMEM),   # bias  (1,)
            pl.BlockSpec((tm, lane), lambda i: (i, 0)),          # y_low tiles
        ],
        out_specs=pl.BlockSpec((tm, lane), lambda i: (i, 0)),
        compiler_params=pltpu.CompilerParams(
            dimension_semantics=("parallel",),   # shard across TCs on v7x
            vmem_limit_bytes=_VMEM_LIMIT,
        ),
        cost_estimate=pl.CostEstimate(
            flops=2 * total,
            transcendentals=0,
            bytes_accessed=2 * total * itemsize,   # one read + one write pass
        ),
    )(scale32, bias32, y2d)

    return out2d.reshape(total)


def linear_correlation(x, y_low, scale, bias):
    """Pallas equivalent of LinearCorrelation.forward: scale * y_low + bias.

    Args:
      x:      unused input (kept for API parity with the PyTorch module)
      y_low:  low-fidelity output, any shape (e.g. NCHW)
      scale:  shape (1,) learned scalar
      bias:   shape (1,) learned scalar
    Returns:
      scale * y_low + bias, same shape/dtype as y_low.
    """
    del x  # not used in the linear case (matches the PyTorch module)

    orig_shape = y_low.shape
    out_dtype = y_low.dtype
    total = math.prod(orig_shape) if orig_shape else 1

    # Keep the scalar params in f32 for the SMEM path (compute promotes to f32).
    scale32 = jnp.asarray(scale, jnp.float32).reshape(1)
    bias32 = jnp.asarray(bias, jnp.float32).reshape(1)

    if total == 0:
        return (scale32[0] * y_low + bias32[0]).astype(out_dtype)

    flat = y_low.reshape(-1)
    sub = _sublane(out_dtype)

    lane = _choose_lane(total, sub)
    if lane is not None:
        # Fast path: fully lane-aligned — no pad, no slice, no concat copies.
        out_flat = _run_aligned(flat, scale32, bias32, lane, out_dtype)
        return out_flat.reshape(orig_shape)

    # Ragged path: kernel on the 128-aligned prefix, tiny (<128 elem) tail in
    # plain JAX, then stitched together (cheaper than whole-array pad + slice).
    main = (total // 128) * 128
    if main == 0:
        # Fewer than 128 elements: not worth a kernel launch.
        return (scale32[0] * flat + bias32[0]).astype(out_dtype).reshape(orig_shape)

    main_lane = _choose_lane(main, sub)
    head = _run_aligned(flat[:main], scale32, bias32, main_lane, out_dtype)
    tail = (scale32[0] * flat[main:] + bias32[0]).astype(out_dtype)
    return jnp.concatenate([head, tail]).reshape(orig_shape)


if __name__ == "__main__":
    key = jax.random.PRNGKey(0)
    kx, ky, kb, kr = jax.random.split(key, 4)

    # Small shapes consistent with the module's usage (NCHW tensors).
    x = jax.random.normal(kx, (2, 4, 16, 16), dtype=jnp.float32)      # unused
    y_low = jax.random.normal(ky, (2, 4, 16, 16), dtype=jnp.float32)

    # Deterministic parameter init matching nn.Parameter(torch.ones(1)/zeros(1)).
    scale = jnp.ones((1,), dtype=jnp.float32)
    bias = jnp.zeros((1,), dtype=jnp.float32)

    out = jax.block_until_ready(linear_correlation(x, y_low, scale, bias))
    ref = scale[0] * y_low + bias[0]
    assert out.shape == y_low.shape and out.dtype == y_low.dtype
    assert jnp.allclose(out, ref, atol=1e-6), "mismatch vs reference (small aligned)"

    # Larger aligned tensor: exercises multi-step grid + partial last row-block.
    y_mid = jax.random.normal(kb, (16, 8, 96, 128), dtype=jnp.float32)
    out_mid = jax.block_until_ready(
        linear_correlation(x, y_mid, scale * 1.5, bias + 0.25))
    ref_mid = 1.5 * y_mid + 0.25
    assert jnp.allclose(out_mid, ref_mid, atol=1e-6), "mismatch vs reference (mid)"

    # Ragged shape: exercises the aligned-prefix + JAX-tail path.
    y_rag = jax.random.normal(kr, (3, 5, 17, 19), dtype=jnp.float32)
    out_rag = jax.block_until_ready(
        linear_correlation(x, y_rag, scale * -0.5, bias + 1.0))
    ref_rag = -0.5 * y_rag + 1.0
    assert jnp.allclose(out_rag, ref_rag, atol=1e-6), "mismatch vs reference (ragged)"

    print("KERNEL_OK")
</pallas_src>

<mosaic_0001>
module attributes {stable_mosaic.version = 11 : i64} {
  func.func @_linear_corr_kernel(%arg0: i32, %arg1: memref<1xf32, #tpu.memory_space<smem>>, %arg2: memref<1xf32, #tpu.memory_space<smem>>, %arg3: memref<8x256xf32, #tpu.memory_space<vmem>>, %arg4: memref<8x256xf32, #tpu.memory_space<vmem>>) attributes {dimension_semantics = [#tpu.dimension_semantics<parallel>], iteration_bounds = array<i64: 1>, scalar_prefetch = 0 : i64, scratch_operands = 0 : i64, tpu.core_type = #tpu.core_type<tc>, window_params = [{transform_indices = @transform_0, window_bounds = array<i64: 1>}, {transform_indices = @transform_1, window_bounds = array<i64: 1>}, {transform_indices = @transform_2, window_bounds = array<i64: 8, 256>}, {transform_indices = @transform_3, window_bounds = array<i64: 8, 256>}]} {
    %c0 = arith.constant 0 : index
    %0 = memref.load %arg1[%c0] : memref<1xf32, #tpu.memory_space<smem>>
    %c0_0 = arith.constant 0 : index
    %1 = memref.load %arg2[%c0_0] : memref<1xf32, #tpu.memory_space<smem>>
    %c0_1 = arith.constant 0 : index
    %c0_2 = arith.constant 0 : index
    %2 = vector.load %arg3[%c0_1, %c0_2] : memref<8x256xf32, #tpu.memory_space<vmem>>, vector<8x256xf32>
    %3 = vector.broadcast %0 : f32 to vector<8x256xf32>
    %4 = arith.mulf %2, %3 : vector<8x256xf32>
    %5 = vector.broadcast %1 : f32 to vector<8x256xf32>
    %6 = arith.addf %4, %5 : vector<8x256xf32>
    %c0_3 = arith.constant 0 : index
    %c0_4 = arith.constant 0 : index
    %7 = vector.load %arg4[%c0_3, %c0_4] : memref<8x256xf32, #tpu.memory_space<vmem>>, vector<8x256xf32>
    tpu.vector_store %arg4[%c0_3, %c0_4], %6 {strides = array<i32>} : memref<8x256xf32, #tpu.memory_space<vmem>>, vector<8x256xf32>,
    return
  }
  func.func @transform_0(%arg0: i32) -> i32 {
    %c0_i32 = arith.constant 0 : i32
    %c0_i32_0 = arith.constant 0 : i32
    return %c0_i32 : i32
  }
  func.func @transform_1(%arg0: i32) -> i32 {
    %c0_i32 = arith.constant 0 : i32
    %c0_i32_0 = arith.constant 0 : i32
    return %c0_i32 : i32
  }
  func.func @transform_2(%arg0: i32) -> (i32, i32) {
    %c0_i32 = arith.constant 0 : i32
    %c0_i32_0 = arith.constant 0 : i32
    return %arg0, %c0_i32 : i32, i32
  }
  func.func @transform_3(%arg0: i32) -> (i32, i32) {
    %c0_i32 = arith.constant 0 : i32
    %c0_i32_0 = arith.constant 0 : i32
    return %arg0, %c0_i32 : i32, i32
  }
}

</mosaic_0001>

<llo_original>
// kernel: tpu_custom_call.1
$region0: #{tpu_custom_call.1}
  #allocation0 [shape = 'u32[]', space=smem, size = 0x4, offset = 0x4, fixed_abs, tag = 'smem constant byte address 0x4 - core index']
  #allocation1 [shape = 'u32[144,128]{1,0:T(1,128)}', space=vmem, size = 0x12000, scoped, tag = 'internal scratch']
  #allocation2 [shape = 'f32[1]{0:T(128)S(6)}', space=smem, size = 0x200, scoped, tag = 'scoped memory for tpu_custom_call.1']
  #allocation3 [shape = 'f32[1]{0:T(128)S(6)}', space=smem, size = 0x200, scoped, tag = 'scoped memory for tpu_custom_call.1']
  %s0 = inlined_call_operand.<no memory space> [shape: f32[1], index: 0, kind: input, shape index: {}]
  %s1 = inlined_call_operand.<no memory space> [shape: f32[1], index: 1, kind: input, shape index: {}]
  %s2 = inlined_call_operand.hbm [shape: f32[8,256], index: 2, kind: input, shape index: {}]
  %s3 = inlined_call_operand.hbm [shape: f32[8,256], index: 3, kind: output, shape index: {}]
  %s4 = sld [smem:[#allocation0]]
  $region26: #{tpu_custom_call.1} parent=0
    _
  %s6 = ssub.s32 1, %s4
  %s7 = scalar_select 0, %s6, %s4
  %8 = sst [smem:[#allocation2]] %s0
  %9 = sst [smem:[#allocation3]] %s1
  $region1: #{tpu_custom_call.1} parent=0
    #allocation4 [shape = 'u8[8192]{0}', space=vmem, size = 0x2000, scoped, tag = 'input window, operand 2, single buffered']
    #allocation5 [shape = 's32[1]{0}', space=sflag, size = 0x4, scoped, tag = 'scoped memory for tpu_custom_call.1']
    #allocation6 [shape = 's32[1]{0}', space=sflag, size = 0x4, scoped, tag = 'scoped memory for tpu_custom_call.1']
    #allocation7 [shape = 'u8[8192]{0}', space=vmem, size = 0x2000, scoped, tag = 'output window, operand 0, single buffered']
    %10 = vsyncpa [#allocation5], 0
    %11 = vsyncpa [#allocation6], 0
    // Predicated region
    $region2: #{tpu_custom_call.1} parent=1 // pred_check
      _
    $region3: #{tpu_custom_call.1} parent=1 // pred_check_branch
      %13 = sbr.rel (0) target = $region5
    $region4: #{tpu_custom_call.1} parent=1 // pred_region
      _
    $region5: #{tpu_custom_call.1} parent=1 // pred_fallthru
      _
    // Predicated region
    $region6: #{tpu_custom_call.1} parent=1 // pred_check
      _
    $region7: #{tpu_custom_call.1} parent=1 // pred_check_branch
      %15 = sbr.rel (0) target = $region9
    $region8: #{tpu_custom_call.1} parent=1 // pred_region
      _
    $region9: #{tpu_custom_call.1} parent=1 // pred_fallthru
      _
    // Predicated region
    $region10: #{tpu_custom_call.1} parent=1 // pred_check
      _
    $region11: #{tpu_custom_call.1} parent=1 // pred_check_branch
      %17 = sbr.rel (0) target = $region13
    $region12: #{tpu_custom_call.1} parent=1 // pred_region
      %s19 = ssub.s32 256, 256
      %20 = vsyncadd [#allocation5], %s19
      %s22 = sshll.u32 [#allocation4], 4
      %s23 = int_to_ptr.vmem [resolvable:$true] %s22
      %25 = dma.hbm_to_vmem [thread:$0]  %s2, 256, %s23, [#allocation5]
    $region13: #{tpu_custom_call.1} parent=1 // pred_fallthru
      _
    // Predicated region
    $region14: #{tpu_custom_call.1} parent=1 // pred_check
      _
    $region15: #{tpu_custom_call.1} parent=1 // pred_check_branch
      %27 = sbr.rel (0) target = $region17
    $region16: #{tpu_custom_call.1} parent=1 // pred_region
      %28 = dma.done [#allocation5], 256
    $region17: #{tpu_custom_call.1} parent=1 // pred_fallthru
      _
    %s29 = sld [smem:[#allocation2]]
    %s30 = sld [smem:[#allocation3]]
    %v31 = vld [vmem:[#allocation4] sm:$0xff]
    %v32 = vld [vmem:[#allocation4 + $0x8] sm:$0xff]
    %v33 = vstv %s29
    %v34 = vmul.f32 %v31, %v33
    %v35 = vmul.f32 %v32, %v33
    %v36 = vstv %s30
    %v37 = vadd.f32 %v34, %v36
    %v38 = vadd.f32 %v35, %v36
    %39 = vst [vmem:[#allocation7] sm:$0xff] %v37
    %40 = vst [vmem:[#allocation7 + $0x8] sm:$0xff] %v38
    // Predicated region
    $region18: #{tpu_custom_call.1} parent=1 // pred_check
      _
    $region19: #{tpu_custom_call.1} parent=1 // pred_check_branch
      %42 = sbr.rel (0) target = $region21
    $region20: #{tpu_custom_call.1} parent=1 // pred_region
      %s44 = ssub.s32 256, 256
      %45 = vsyncadd [#allocation6], %s44
      %s47 = sshll.u32 [#allocation7], 4
      %s48 = int_to_ptr.vmem [resolvable:$true] %s47
      %50 = dma.vmem_to_hbm [thread:$0]  %s48, 256, %s3, [#allocation6]
    $region21: #{tpu_custom_call.1} parent=1 // pred_fallthru
      _
    // Predicated region
    $region22: #{tpu_custom_call.1} parent=1 // pred_check
      _
    $region23: #{tpu_custom_call.1} parent=1 // pred_check_branch
      %52 = sbr.rel (0) target = $region25
    $region24: #{tpu_custom_call.1} parent=1 // pred_region
      %53 = dma.done [#allocation6], 256
    $region25: #{tpu_custom_call.1} parent=1 // pred_fallthru
      _
    %54 = vsyncpa [#allocation5], 1
    %55 = vsyncpa [#allocation6], 1

</llo_original>
